<compile_context>
chip_gen: v6e
topology: v6e:2x2x1
jax: 0.10.0
libtpu: 0.0.40
codegen_flags: <defaults>
</compile_context>

<pallas_src>
import jax
import jax.numpy as jnp
from jax.experimental import pallas as pl
from jax.experimental.pallas import tpu as pltpu


def _proj_kernel(a_ref, w_ref, b_ref, o_ref):
    # a_ref: [TM, K], w_ref: [K, TN] (pre-transposed in wrapper), b_ref: [1, TN] (f32)
    # Plain NN-form matmul on the MXU, f32 accumulation; bias add in f32; cast on store.
    acc = jnp.dot(a_ref[...], w_ref[...], preferred_element_type=jnp.float32)
    o_ref[...] = (acc + b_ref[...]).astype(o_ref.dtype)


def _round_up(x, m):
    return ((x + m - 1) // m) * m


def feature_projection_single(a, b, weight, bias, *, tm=None, tn=None, out_dtype=None):
    """Pallas equivalent of FeatureProjectionSingle.forward(a, b) == Linear(a).

    `b` is accepted to mirror the PyTorch interface but ignored, exactly like the
    reference module.  `weight` is in PyTorch Linear layout [out_dim, in_dim].
    """
    del b  # unused by design (module only projects the first input)
    batch, in_dim = a.shape
    out_dim, wk = weight.shape
    assert wk == in_dim, "weight must be [out_dim, in_dim] (PyTorch Linear layout)"
    if out_dtype is None:
        out_dtype = a.dtype

    a_item = jnp.dtype(a.dtype).itemsize
    w_item = jnp.dtype(weight.dtype).itemsize
    o_item = jnp.dtype(out_dtype).itemsize

    # ---- one-time wrapper-side transpose: kernel sees [K, N], NN-form dot ------------
    w_t = weight.T  # [in_dim, out_dim]; one HBM pass at "weight load" time, amortized.

    # ---- N tiling: keep the whole weight resident when small, tile N when large ------
    RESIDENT_W_BYTES = 8 << 20  # conservative vs v7x 32 MiB scoped-VMEM default
    if tn is None:
        if in_dim * out_dim * w_item <= RESIDENT_W_BYTES:
            tn = out_dim            # full-extent N block: exact shape, no pad, no slice
        else:
            tn = 512 if out_dim % 512 == 0 else (256 if out_dim % 256 == 0 else 128)
    n_pad = out_dim if tn == out_dim else _round_up(out_dim, tn)
    bias_f32 = bias.astype(jnp.float32)
    if n_pad != out_dim:
        # Rare path (large, non-128-multiple out_dim): pad W/bias columns with zeros.
        w_t = jnp.pad(w_t, ((0, 0), (0, n_pad - out_dim)))
        bias_f32 = jnp.pad(bias_f32, (0, n_pad - out_dim))
    bias2d = bias_f32.reshape(1, n_pad)
    resident_w = (tn == n_pad)      # single N block -> constant index_map for W / bias

    # ---- batch tile (streamed axis): dtype-aware sublane multiple, >=2 grid steps ----
    sub = {4: 8, 2: 16, 1: 32}.get(a_item, 8)
    if tm is None:
        tm = 256                                    # big tiles amortize ~0.35us/step
        if batch >= 2 * sub:                        # guarantee >=2 steps (v7x megacore)
            tm = min(tm, _round_up(pl.cdiv(batch, 2), sub))
    if tm >= batch:
        tm = batch                                  # full-extent block is always legal
    else:
        tm = max(sub, (tm // sub) * sub)            # sublane-aligned for this dtype
    grid = (pl.cdiv(batch, tm), n_pad // tn)

    # ---- explicit VMEM budget -> vmem_limit_bytes -------------------------------------
    w_bufs = 1 if resident_w else 2
    need = (2 * tm * in_dim * a_item            # A, double-buffered
            + 2 * tm * tn * o_item              # O, double-buffered
            + w_bufs * in_dim * tn * w_item     # W (single-buffered when resident)
            + 2 * tn * 4)                       # bias (f32)
    vmem_limit = min(64 << 20, max(int(1.5 * need) + (4 << 20), 16 << 20))

    cost = pl.CostEstimate(
        flops=2 * batch * in_dim * n_pad,
        transcendentals=0,
        bytes_accessed=(batch * in_dim * a_item      # A read
                        + in_dim * n_pad * w_item    # W read (once)
                        + n_pad * 4                  # bias read
                        + batch * n_pad * o_item),   # O write
    )
    cp = pltpu.CompilerParams(
        dimension_semantics=("parallel", "parallel"),   # megacore shard on v7x
        vmem_limit_bytes=vmem_limit,
    )

    a_spec = pl.BlockSpec((tm, in_dim), lambda i, j: (i, 0))
    o_spec = pl.BlockSpec((tm, tn), lambda i, j: (i, j))

    def _run(mode):
        kw = {} if mode is None else {"pipeline_mode": mode}
        w_spec = pl.BlockSpec((in_dim, tn), lambda i, j: (0, j), **kw)
        b_spec = pl.BlockSpec((1, tn), lambda i, j: (0, j), **kw)
        return pl.pallas_call(
            _proj_kernel,
            out_shape=jax.ShapeDtypeStruct((batch, n_pad), out_dtype),
            grid=grid,
            in_specs=[a_spec, w_spec, b_spec],
            out_specs=o_spec,
            compiler_params=cp,
            cost_estimate=cost,
        )(a, w_t, bias2d)

    if resident_w:
        # Resident W/bias: ask for single buffering (halves their VMEM footprint on v7x).
        try:
            out = _run(pl.Buffered(1))
        except Exception:   # older JAX without single-buffer support: default buffering
            out = _run(None)
    else:
        out = _run(None)

    # TODO(synk): add an innermost "arbitrary" K grid axis with an f32 VMEM accumulator
    # (pl.when init/finalize) for in_dim too large to keep a (tm, in_dim) tile in VMEM.
    return out[:, :out_dim] if n_pad != out_dim else out


if __name__ == "__main__":
    # Module hyper-params (synthetic, deterministic init -- no checkpoint load).
    in_dim_a, in_dim_b = 32, 16
    out_dim_a, out_dim_b = 64, 16
    batch = 64

    key = jax.random.PRNGKey(0)
    k_a, k_b, k_w, k_bias = jax.random.split(key, 4)

    a = jax.random.normal(k_a, (batch, in_dim_a), dtype=jnp.float32)
    b = jax.random.normal(k_b, (batch, in_dim_b), dtype=jnp.float32)  # ignored, like the module

    # nn.Linear(in_dim_a, out_dim_a): weight [out_dim_a, in_dim_a], bias [out_dim_a]
    bound = 1.0 / jnp.sqrt(in_dim_a)
    weight = jax.random.uniform(k_w, (out_dim_a, in_dim_a), jnp.float32, -bound, bound)
    bias = jax.random.uniform(k_bias, (out_dim_a,), jnp.float32, -bound, bound)

    # f32 path (tight correctness check); tm heuristic picks 32 -> batch grid of 2 steps.
    out = jax.block_until_ready(feature_projection_single(a, b, weight, bias))
    ref = a @ weight.T + bias
    assert out.shape == (batch, out_dim_a)
    assert jnp.allclose(out, ref, atol=1e-5, rtol=1e-5)

    # bf16 path (recommended production dtype): halves streamed A/O HBM bytes and runs
    # the MXU at native bf16 rate; accumulation stays f32 inside the kernel.
    a16 = a.astype(jnp.bfloat16)
    w16 = weight.astype(jnp.bfloat16)
    out16 = jax.block_until_ready(
        feature_projection_single(a16, b, w16, bias, out_dtype=jnp.bfloat16))
    ref16 = a16.astype(jnp.float32) @ w16.astype(jnp.float32).T + bias
    assert out16.shape == (batch, out_dim_a) and out16.dtype == jnp.bfloat16
    assert jnp.allclose(out16.astype(jnp.float32), ref16, atol=3e-2, rtol=3e-2)

    print("KERNEL_OK")
</pallas_src>

<mosaic_0001>
module attributes {stable_mosaic.version = 11 : i64} {
  func.func @_proj_kernel(%arg0: i32, %arg1: i32, %arg2: memref<32x32xf32, #tpu.memory_space<vmem>>, %arg3: memref<32x64xf32, #tpu.memory_space<vmem>>, %arg4: memref<1x64xf32, #tpu.memory_space<vmem>>, %arg5: memref<32x64xf32, #tpu.memory_space<vmem>>) attributes {dimension_semantics = [#tpu.dimension_semantics<parallel>, #tpu.dimension_semantics<parallel>], iteration_bounds = array<i64: 2, 1>, scalar_prefetch = 0 : i64, scratch_operands = 0 : i64, tpu.core_type = #tpu.core_type<tc>, window_params = [{transform_indices = @transform_0, window_bounds = array<i64: 32, 32>}, {pipeline_mode = #tpu.pipeline_mode<synchronous>, transform_indices = @transform_1, window_bounds = array<i64: 32, 64>}, {pipeline_mode = #tpu.pipeline_mode<synchronous>, transform_indices = @transform_2, window_bounds = array<i64: 1, 64>}, {transform_indices = @transform_3, window_bounds = array<i64: 32, 64>}]} {
    %c0 = arith.constant 0 : index
    %c0_0 = arith.constant 0 : index
    %0 = vector.load %arg2[%c0, %c0_0] : memref<32x32xf32, #tpu.memory_space<vmem>>, vector<32x32xf32>
    %c0_1 = arith.constant 0 : index
    %c0_2 = arith.constant 0 : index
    %1 = vector.load %arg3[%c0_1, %c0_2] : memref<32x64xf32, #tpu.memory_space<vmem>>, vector<32x64xf32>
    %cst = arith.constant dense<0.000000e+00> : vector<32x64xf32>
    %2 = tpu.matmul %0, %1, %cst {dimension_numbers = #tpu.dot_dimension_numbers<[1], [0], [0], [1], [0, 0, 1, 1], [], []>} : vector<32x32xf32>, vector<32x64xf32>, vector<32x64xf32> -> vector<32x64xf32>
    %c0_3 = arith.constant 0 : index
    %c0_4 = arith.constant 0 : index
    %3 = vector.load %arg4[%c0_3, %c0_4] : memref<1x64xf32, #tpu.memory_space<vmem>>, vector<1x64xf32>
    %4 = vector.broadcast %3 : vector<1x64xf32> to vector<32x64xf32>
    %5 = arith.addf %2, %4 : vector<32x64xf32>
    %c0_5 = arith.constant 0 : index
    %c0_6 = arith.constant 0 : index
    %6 = vector.load %arg5[%c0_5, %c0_6] : memref<32x64xf32, #tpu.memory_space<vmem>>, vector<32x64xf32>
    tpu.vector_store %arg5[%c0_5, %c0_6], %5 {strides = array<i32>} : memref<32x64xf32, #tpu.memory_space<vmem>>, vector<32x64xf32>,
    return
  }
  func.func @transform_0(%arg0: i32, %arg1: i32) -> (i32, i32) {
    %c0_i32 = arith.constant 0 : i32
    %c0_i32_0 = arith.constant 0 : i32
    return %arg0, %c0_i32 : i32, i32
  }
  func.func @transform_1(%arg0: i32, %arg1: i32) -> (i32, i32) {
    %c0_i32 = arith.constant 0 : i32
    %c0_i32_0 = arith.constant 0 : i32
    return %c0_i32, %arg1 : i32, i32
  }
  func.func @transform_2(%arg0: i32, %arg1: i32) -> (i32, i32) {
    %c0_i32 = arith.constant 0 : i32
    %c0_i32_0 = arith.constant 0 : i32
    return %c0_i32, %arg1 : i32, i32
  }
  func.func @transform_3(%arg0: i32, %arg1: i32) -> (i32, i32) {
    %c0_i32 = arith.constant 0 : i32
    return %arg0, %arg1 : i32, i32
  }
}

module attributes {stable_mosaic.version = 11 : i64} {
  func.func @_proj_kernel(%arg0: i32, %arg1: i32, %arg2: memref<32x32xf32, #tpu.memory_space<vmem>>, %arg3: memref<32x64xf32, #tpu.memory_space<vmem>>, %arg4: memref<1x64xf32, #tpu.memory_space<vmem>>, %arg5: memref<32x64xf32, #tpu.memory_space<vmem>>) attributes {dimension_semantics = [#tpu.dimension_semantics<parallel>, #tpu.dimension_semantics<parallel>], iteration_bounds = array<i64: 2, 1>, scalar_prefetch = 0 : i64, scratch_operands = 0 : i64, tpu.core_type = #tpu.core_type<tc>, window_params = [{transform_indices = @transform_0, window_bounds = array<i64: 32, 32>}, {transform_indices = @transform_1, window_bounds = array<i64: 32, 64>}, {transform_indices = @transform_2, window_bounds = array<i64: 1, 64>}, {transform_indices = @transform_3, window_bounds = array<i64: 32, 64>}]} {
    %c0 = arith.constant 0 : index
    %c0_0 = arith.constant 0 : index
    %0 = vector.load %arg2[%c0, %c0_0] : memref<32x32xf32, #tpu.memory_space<vmem>>, vector<32x32xf32>
    %c0_1 = arith.constant 0 : index
    %c0_2 = arith.constant 0 : index
    %1 = vector.load %arg3[%c0_1, %c0_2] : memref<32x64xf32, #tpu.memory_space<vmem>>, vector<32x64xf32>
    %cst = arith.constant dense<0.000000e+00> : vector<32x64xf32>
    %2 = tpu.matmul %0, %1, %cst {dimension_numbers = #tpu.dot_dimension_numbers<[1], [0], [0], [1], [0, 0, 1, 1], [], []>} : vector<32x32xf32>, vector<32x64xf32>, vector<32x64xf32> -> vector<32x64xf32>
    %c0_3 = arith.constant 0 : index
    %c0_4 = arith.constant 0 : index
    %3 = vector.load %arg4[%c0_3, %c0_4] : memref<1x64xf32, #tpu.memory_space<vmem>>, vector<1x64xf32>
    %4 = vector.broadcast %3 : vector<1x64xf32> to vector<32x64xf32>
    %5 = arith.addf %2, %4 : vector<32x64xf32>
    %c0_5 = arith.constant 0 : index
    %c0_6 = arith.constant 0 : index
    %6 = vector.load %arg5[%c0_5, %c0_6] : memref<32x64xf32, #tpu.memory_space<vmem>>, vector<32x64xf32>
    tpu.vector_store %arg5[%c0_5, %c0_6], %5 {strides = array<i32>} : memref<32x64xf32, #tpu.memory_space<vmem>>, vector<32x64xf32>,
    return
  }
  func.func @transform_0(%arg0: i32, %arg1: i32) -> (i32, i32) {
    %c0_i32 = arith.constant 0 : i32
    %c0_i32_0 = arith.constant 0 : i32
    return %arg0, %c0_i32 : i32, i32
  }
  func.func @transform_1(%arg0: i32, %arg1: i32) -> (i32, i32) {
    %c0_i32 = arith.constant 0 : i32
    %c0_i32_0 = arith.constant 0 : i32
    return %c0_i32, %arg1 : i32, i32
  }
  func.func @transform_2(%arg0: i32, %arg1: i32) -> (i32, i32) {
    %c0_i32 = arith.constant 0 : i32
    %c0_i32_0 = arith.constant 0 : i32
    return %c0_i32, %arg1 : i32, i32
  }
  func.func @transform_3(%arg0: i32, %arg1: i32) -> (i32, i32) {
    %c0_i32 = arith.constant 0 : i32
    return %arg0, %arg1 : i32, i32
  }
}

</mosaic_0001>

<llo_original>
// kernel: tpu_custom_call.1
$region0: #{tpu_custom_call.1}
  #allocation0 [shape = 'u32[]', space=smem, size = 0x4, offset = 0x4, fixed_abs, tag = 'smem constant byte address 0x4 - core index']
  #allocation1 [shape = 'u32[144,128]{1,0:T(1,128)}', space=vmem, size = 0x12000, scoped, tag = 'internal scratch']
  %s0 = inlined_call_operand.vmem [shape: f32[64,32], index: 0, kind: input, shape index: {}]
  %s1 = inlined_call_operand.vmem [shape: f32[32,64], index: 1, kind: input, shape index: {}]
  %s2 = inlined_call_operand.vmem [shape: f32[1,64], index: 2, kind: input, shape index: {}]
  %s3 = inlined_call_operand.hbm [shape: f32[64,64], index: 3, kind: output, shape index: {}]
  %s4 = sld [smem:[#allocation0]]
  $region45: #{tpu_custom_call.1} parent=0
    _
  %s6 = ssub.s32 1, %s4
  %s7 = scalar_select 0, %s6, %s4
  $region1: #{tpu_custom_call.1} parent=0
    #allocation2 [shape = 'u8[32768]{0}', space=vmem, size = 0x8000, scoped, tag = 'output window, operand 0']
    #allocation3 [shape = 's32[2]{0}', space=sflag, size = 0x8, scoped, tag = 'scoped memory for tpu_custom_call.1']
    %8 = vsyncpa [#allocation3], 0
    %s9 = scalar_lea.sflag [#allocation3], 1
    %10 = vsyncpa %s9, 0
    loop: start=0, step=1, limit=4
    $region2: #{tpu_custom_call.1} parent=1 // loop_pre_header
      _
    $region3: #{tpu_custom_call.1} parent=1 // loop_header
      %s12 = sphi 0, %s16
      %p13 = scmp.ge.s32.totalorder %s12, 4
      %s19 = sphi 0, %s31
      %s20 = sphi 0, %s27
      %s21 = sphi 0, %s19
      %s22 = sphi 0, %s20
      %s23 = sphi 0, %s21
      %s24 = sphi 0, %s22
      %s34 = sphi 0, %s36
      %s37 = sphi 0, %s34
      %s38 = sphi 0, %s37
      %s54 = sphi 0, %s38
      %s60 = sphi 0, %s62
      %s63 = sphi 0, %s60
      %s64 = sphi 0, %s63
      %s80 = sphi 0, %s64
      %s86 = sphi 0, %s88
      %s89 = sphi 0, %s86
      %s90 = sphi 0, %s89
      %s106 = sphi 0, %s90
      %s114 = sphi 0, %s116
      %s117 = sphi 0, %s114
      %s118 = sphi 0, %s117
      %s134 = sphi 0, %s118
    $region4: #{tpu_custom_call.1} parent=1 // loop_header_branch
      %15 = sbr.rel (%p13) target = $region8
    $region5: #{tpu_custom_call.1} parent=1 // loop_body
      %s17 = ssub.s32 %s12, 1
      %s18 = ssub.s32 %s12, 2
      %s25 = sadd.s32 1, %s20
      %p26 = scmp.ge.s32.totalorder %s25, 1
      %s27 = scalar_select %p26, 0, %s25
      %s28 = sadd.s32 1, %s19
      %s29 = scalar_select %p26, %s28, %s19
      %p30 = scmp.ge.s32.totalorder %s29, 2
      %s31 = scalar_select %p30, 0, %s29
      %s32 = ssub.s32 %s19, %s31
      %p33 = scmp.eq.s32.totalorder %s32, 0
      %s35 = sadd.s32 %s34, 1
      %s36 = scalar_select %p33, %s34, %s35
      %p39 = pneg %p33
      %p40 = scmp.eq.s32.totalorder %s12, 1
      %p41 = por %p39, %p40
      %p42 = scmp.ne.s32.totalorder %s34, %s37
      %p43 = scmp.eq.s32.totalorder %s12, 0
      %p44 = por %p42, %p43
      %p45 = scmp.ne.s32.totalorder %s34, %s37
      %p46 = scmp.eq.s32.totalorder %s17, 1
      %p47 = por %p45, %p46
      %p48 = scmp.ne.s32.totalorder %s37, %s38
      %p49 = scmp.eq.s32.totalorder %s17, 0
      %p50 = por %p48, %p49
      %p51 = scmp.ne.s32.totalorder %s37, %s38
      %p52 = scmp.eq.s32.totalorder %s18, 1
      %p53 = por %p51, %p52
      %p55 = scmp.ne.s32.totalorder %s38, %s54
      %p56 = scmp.eq.s32.totalorder %s18, 0
      %p57 = por %p55, %p56
      %s58 = ssub.s32 %s20, %s27
      %p59 = scmp.eq.s32.totalorder %s58, 0
      %s61 = sadd.s32 %s60, 1
      %s62 = scalar_select %p59, %s60, %s61
      %p65 = pneg %p59
      %p66 = scmp.eq.s32.totalorder %s12, 1
      %p67 = por %p65, %p66
      %p68 = scmp.ne.s32.totalorder %s60, %s63
      %p69 = scmp.eq.s32.totalorder %s12, 0
      %p70 = por %p68, %p69
      %p71 = scmp.ne.s32.totalorder %s60, %s63
      %p72 = scmp.eq.s32.totalorder %s17, 1
      %p73 = por %p71, %p72
      %p74 = scmp.ne.s32.totalorder %s63, %s64
      %p75 = scmp.eq.s32.totalorder %s17, 0
      %p76 = por %p74, %p75
      %p77 = scmp.ne.s32.totalorder %s63, %s64
      %p78 = scmp.eq.s32.totalorder %s18, 1
      %p79 = por %p77, %p78
      %p81 = scmp.ne.s32.totalorder %s64, %s80
      %p82 = scmp.eq.s32.totalorder %s18, 0
      %p83 = por %p81, %p82
      %s84 = ssub.s32 %s20, %s27
      %p85 = scmp.eq.s32.totalorder %s84, 0
      %s87 = sadd.s32 %s86, 1
      %s88 = scalar_select %p85, %s86, %s87
      %p91 = pneg %p85
      %p92 = scmp.eq.s32.totalorder %s12, 1
      %p93 = por %p91, %p92
      %p94 = scmp.ne.s32.totalorder %s86, %s89
      %p95 = scmp.eq.s32.totalorder %s12, 0
      %p96 = por %p94, %p95
      %p97 = scmp.ne.s32.totalorder %s86, %s89
      %p98 = scmp.eq.s32.totalorder %s17, 1
      %p99 = por %p97, %p98
      %p100 = scmp.ne.s32.totalorder %s89, %s90
      %p101 = scmp.eq.s32.totalorder %s17, 0
      %p102 = por %p100, %p101
      %p103 = scmp.ne.s32.totalorder %s89, %s90
      %p104 = scmp.eq.s32.totalorder %s18, 1
      %p105 = por %p103, %p104
      %p107 = scmp.ne.s32.totalorder %s90, %s106
      %p108 = scmp.eq.s32.totalorder %s18, 0
      %p109 = por %p107, %p108
      %s110 = ssub.s32 %s19, %s31
      %s111 = ssub.s32 %s20, %s27
      %s112 = sor.u32 %s110, %s111
      %p113 = scmp.eq.s32.totalorder %s112, 0
      %s115 = sadd.s32 %s114, 1
      %s116 = scalar_select %p113, %s114, %s115
      %p119 = pneg %p113
      %p120 = scmp.eq.s32.totalorder %s12, 1
      %p121 = por %p119, %p120
      %p122 = scmp.ne.s32.totalorder %s114, %s117
      %p123 = scmp.eq.s32.totalorder %s12, 0
      %p124 = por %p122, %p123
      %p125 = scmp.ne.s32.totalorder %s114, %s117
      %p126 = scmp.eq.s32.totalorder %s17, 1
      %p127 = por %p125, %p126
      %p128 = scmp.ne.s32.totalorder %s117, %s118
      %p129 = scmp.eq.s32.totalorder %s17, 0
      %p130 = por %p128, %p129
      %p131 = scmp.ne.s32.totalorder %s117, %s118
      %p132 = scmp.eq.s32.totalorder %s18, 1
      %p133 = por %p131, %p132
      %p135 = scmp.ne.s32.totalorder %s118, %s134
      %p136 = scmp.eq.s32.totalorder %s18, 0
      %p137 = por %p135, %p136
      %p138 = scmp.le.s32.totalorder 1, %s12
      %p139 = scmp.lt.s32.totalorder %s12, 3
      %p140 = pnand %p138, %p139
      %p141 = pneg %p140
      // Predicated region
      $region9: #{tpu_custom_call.1} parent=5 // pred_check
        _
      $region10: #{tpu_custom_call.1} parent=5 // pred_check_branch
        %143 = sbr.rel (%p140) target = $region12
      $region11: #{tpu_custom_call.1} parent=5 // pred_region
        %s144 = ssub.s32 %s12, 1
        // Predicated region
        $region13: #{tpu_custom_call.1} parent=11 // pred_check
          %p145 = pneg %p76
        $region14: #{tpu_custom_call.1} parent=11 // pred_check_branch
          %147 = sbr.rel (%p145) target = $region16
        $region15: #{tpu_custom_call.1} parent=11 // pred_region
          %p148 = scmp.lt.s32.totalorder %s22, 0
          %s149 = scalar_select %p148, %s22, 0
          %s150 = smul.addr %s149, 8
          %s151 = scalar_lea.vmem %s1, %s150
        $region16: #{tpu_custom_call.1} parent=11 // pred_fallthru
          _
        // Predicated region
        $region17: #{tpu_custom_call.1} parent=11 // pred_check
          %p152 = pneg %p102
        $region18: #{tpu_custom_call.1} parent=11 // pred_check_branch
          %154 = sbr.rel (%p152) target = $region20
        $region19: #{tpu_custom_call.1} parent=11 // pred_region
          %p155 = scmp.lt.s32.totalorder %s22, 0
          %s156 = scalar_select %p155, %s22, 0
          %s157 = scalar_lea.vmem %s2, %s156
        $region20: #{tpu_custom_call.1} parent=11 // pred_fallthru
          _
      $region12: #{tpu_custom_call.1} parent=5 // pred_fallthru
        _
      %p158 = scmp.lt.s32.totalorder %s12, 2
      // Predicated region
      $region21: #{tpu_custom_call.1} parent=5 // pred_check
        %p159 = pneg %p158
      $region22: #{tpu_custom_call.1} parent=5 // pred_check_branch
        %161 = sbr.rel (%p159) target = $region24
      $region23: #{tpu_custom_call.1} parent=5 // pred_region
        // Predicated region
        $region25: #{tpu_custom_call.1} parent=23 // pred_check
          %p162 = pneg %p44
        $region26: #{tpu_custom_call.1} parent=23 // pred_check_branch
          %164 = sbr.rel (%p162) target = $region28
        $region27: #{tpu_custom_call.1} parent=23 // pred_region
          %s165 = smul.u32 4, %s19
          %p166 = scmp.lt.s32.totalorder %s165, 7
          %s167 = scalar_select %p166, %s165, 7
          %s168 = smul.addr %s167, 8
          %s169 = scalar_lea.vmem %s0, %s168
          %s170 = smul.u32 4, %s19
        $region28: #{tpu_custom_call.1} parent=23 // pred_fallthru
          _
      $region24: #{tpu_custom_call.1} parent=5 // pred_fallthru
        _
      %p171 = scmp.le.s32.totalorder 1, %s12
      %p172 = scmp.lt.s32.totalorder %s12, 3
      %p173 = pnand %p171, %p172
      %p174 = pneg %p173
      // Predicated region
      $region29: #{tpu_custom_call.1} parent=5 // pred_check
        _
      $region30: #{tpu_custom_call.1} parent=5 // pred_check_branch
        %176 = sbr.rel (%p173) target = $region32
      $region31: #{tpu_custom_call.1} parent=5 // pred_region
        %s177 = ssub.s32 %s12, 1
        %s178 = smul.u32 4, %s21
        %p179 = scmp.lt.s32.totalorder %s178, 7
        %s180 = scalar_select %p179, %s178, 7
        %s181 = smul.addr %s180, 8
        %s182 = scalar_lea.vmem %s0, %s181
        %p183 = pneg %p50
        %p184 = pneg %p47
        %p185 = scmp.lt.s32.totalorder %s22, 0
        %s186 = scalar_select %p185, %s22, 0
        %s187 = smul.addr %s186, 8
        %s188 = scalar_lea.vmem %s1, %s187
        %p189 = pneg %p76
        %p190 = pneg %p73
        %p191 = scmp.lt.s32.totalorder %s22, 0
        %s192 = scalar_select %p191, %s22, 0
        %s193 = scalar_lea.vmem %s2, %s192
        %p194 = pneg %p102
        %p195 = pneg %p99
        %p196 = pneg %p130
        %p197 = pneg %p127
        %s198 = sand.u32 %s117, 1
        %s199 = scalar_lea.sflag [#allocation3], %s198
        %s200 = sand.u32 %s117, 1
        %s201 = smul.addr %s200, 32
        %s202 = scalar_lea.vmem [#allocation2], %s201
        %s203 = smul.u32 4, %s21
        %p204 = scmp.lt.s32.totalorder %s203, 7
        %s205 = scalar_select %p204, %s203, 7
        %s206 = smul.addr %s205, 8
        %s207 = scalar_lea.vmem %s0, %s206
        %s208 = smul.u32 4, %s21
        %p209 = scmp.lt.s32.totalorder %s22, 0
        %s210 = scalar_select %p209, %s22, 0
        %s211 = smul.addr %s210, 8
        %s212 = scalar_lea.vmem %s1, %s211
        %p213 = scmp.lt.s32.totalorder %s22, 0
        %s214 = scalar_select %p213, %s22, 0
        %s215 = scalar_lea.vmem %s2, %s214
        %s216 = smul.u32 4, %s21
        %v217 = vld [vmem:[%s207] sm:$0xff]
        %v218 = vld [vmem:[%s207 + $0x8] sm:$0xff]
        %v219 = vld [vmem:[%s207 + $0x10] sm:$0xff]
        %v220 = vld [vmem:[%s207 + $0x18] sm:$0xff]
        %v221 = vld [vmem:[%s212] sm:$0xff]
        %v222 = vld [vmem:[%s212 + $0x8] sm:$0xff]
        %v223 = vld [vmem:[%s212 + $0x10] sm:$0xff]
        %v224 = vld [vmem:[%s212 + $0x18] sm:$0xff]
        %v225 = vld [vmem:[%s215] sm:$0x1]
        %v227 = vlaneseq
        %v228 = vshrl.u32 %v227, 7
        %v229 = vsub.s32 0, %v228
        %v230 = vrot.slane %v225, %v229
        %vm232 = vcmask 261120
        %v234 = vsel %vm232, %v217, 0
        %v237 = vsel %vm232, %v218, 0
        %v240 = vsel %vm232, %v219, 0
        %v243 = vsel %vm232, %v220, 0
        %245 = vmatprep.subr.mxu0 0.0
        %246 = vmatpush1.msra.mxu0 0.0
        %247 = vmatprep.subr.mxu0 0.0
        %248 = vmatpush1.msra.mxu0 0.0
        %249 = vmatprep.subr.mxu0 0.0
        %250 = vmatpush1.msra.mxu0 0.0
        %251 = vmatprep.subr.mxu0 0.0
        %252 = vmatpush1.msra.mxu0 0.0
        %253 = vmatprep.subr.mxu0 0.0
        %254 = vmatpush1.msra.mxu0 0.0
        %255 = vmatprep.subr.mxu0 0.0
        %256 = vmatpush1.msra.mxu0 0.0
        %257 = vmatprep.subr.mxu0 0.0
        %258 = vmatpush1.msra.mxu0 0.0
        %259 = vmatprep.subr.mxu0 0.0
        %260 = vmatpush1.msra.mxu0 0.0
        %261 = vmatprep.subr.mxu0 0.0
        %262 = vmatpush1.msra.mxu0 0.0
        %263 = vmatprep.subr.mxu0 0.0
        %264 = vmatpush1.msra.mxu0 0.0
        %265 = vmatprep.subr.mxu0 0.0
        %266 = vmatpush1.msra.mxu0 0.0
        %267 = vmatprep.subr.mxu0 0.0
        %268 = vmatpush1.msra.mxu0 0.0
        %269 = vmatprep.subr.mxu0 0.0
        %270 = vmatpush1.msra.mxu0 %v224
        %271 = vmatprep.subr.mxu0 0.0
        %272 = vmatpush1.msra.mxu0 %v223
        %273 = vmatprep.subr.mxu0 0.0
        %274 = vmatpush1.msra.mxu0 %v222
        %275 = vmatprep.subr.mxu0 0.0
        %276 = vmatpush1.msra.mxu0 %v221
        %277 = vmatprep.subr.mxu0 0.0
        %278 = vmatpush2.msra.mxu0 0.0
        %279 = vmatprep.subr.mxu0 0.0
        %280 = vmatpush2.msra.mxu0 0.0
        %281 = vmatprep.subr.mxu0 0.0
        %282 = vmatpush2.msra.mxu0 0.0
        %283 = vmatprep.subr.mxu0 0.0
        %284 = vmatpush2.msra.mxu0 0.0
        %285 = vmatprep.subr.mxu0 0.0
        %286 = vmatpush2.msra.mxu0 0.0
        %287 = vmatprep.subr.mxu0 0.0
        %288 = vmatpush2.msra.mxu0 0.0
        %289 = vmatprep.subr.mxu0 0.0
        %290 = vmatpush2.msra.mxu0 0.0
        %291 = vmatprep.subr.mxu0 0.0
        %292 = vmatpush2.msra.mxu0 0.0
        %293 = vmatprep.subr.mxu0 0.0
        %294 = vmatpush2.msra.mxu0 0.0
        %295 = vmatprep.subr.mxu0 0.0
        %296 = vmatpush2.msra.mxu0 0.0
        %297 = vmatprep.subr.mxu0 0.0
        %298 = vmatpush2.msra.mxu0 0.0
        %299 = vmatprep.subr.mxu0 0.0
        %300 = vmatpush2.msra.mxu0 0.0
        %301 = vmatprep.subr.mxu0 0.0
        %302 = vmatpush2.msra.mxu0 0.0
        %303 = vmatprep.subr.mxu0 0.0
        %304 = vmatpush2.msra.mxu0 0.0
        %305 = vmatprep.subr.mxu0 0.0
        %306 = vmatpush2.msra.mxu0 0.0
        %307 = vmatprep.subr.mxu0 0.0
        %308 = vmatpush2.msra.mxu0 0.0
        %309 = vmatprep.mubr.f32.mxu0 0.0
        %310 = vmatmul.mubr.f32.gmra.mxu0 %v234
        %v311 = vpop.f32.mrf.mxu0
        %v312 = vadd.f32 %v230, %v311
        %v313 = vpop.f32.mrf.mxu0
        %314 = vmatprep.mubr.f32.mxu0 0.0
        %315 = vmatmul.mubr.f32.gmra.mxu0 %v237
        %v316 = vpop.f32.mrf.mxu0
        %v317 = vadd.f32 %v230, %v316
        %v318 = vpop.f32.mrf.mxu0
        %319 = vmatprep.mubr.f32.mxu0 0.0
        %320 = vmatmul.mubr.f32.gmra.mxu0 %v240
        %v321 = vpop.f32.mrf.mxu0
        %v322 = vadd.f32 %v230, %v321
        %v323 = vpop.f32.mrf.mxu0
        %324 = vmatprep.mubr.f32.mxu0 0.0
        %325 = vmatmul.mubr.f32.gmra.mxu0 %v243
        %v326 = vpop.f32.mrf.mxu0
        %v327 = vadd.f32 %v230, %v326
        %v328 = vpop.f32.mrf.mxu0
        %329 = vdwg.mxu0
        %vm330 = vcmask 523264
        %331 = vst.msk [vmem:[%s202] sm:$0xff] %vm330, %v312
        %332 = vst.msk [vmem:[%s202 + $0x8] sm:$0xff] %vm330, %v317
        %333 = vst.msk [vmem:[%s202 + $0x10] sm:$0xff] %vm330, %v322
        %334 = vst.msk [vmem:[%s202 + $0x18] sm:$0xff] %vm330, %v327
        %s335 = sand.u32 %s117, 1
        %s336 = scalar_lea.sflag [#allocation3], %s335
        %s337 = sand.u32 %s117, 1
        %s338 = smul.addr %s337, 32
        %s339 = scalar_lea.vmem [#allocation2], %s338
        // Predicated region
        $region33: #{tpu_custom_call.1} parent=31 // pred_check
          %p340 = pneg %p127
        $region34: #{tpu_custom_call.1} parent=31 // pred_check_branch
          %342 = sbr.rel (%p340) target = $region36
        $region35: #{tpu_custom_call.1} parent=31 // pred_region
          %s343 = smul.u32 4, %s21
          %s345 = ssub.s32 512, 512
          %346 = vsyncadd %s336, %s345
          %s347 = sadd.s32 %s22, %s343
          %s348 = smul.addr %s347, 128
          %s349 = scalar_lea.hbm %s3, %s348
          %s350 = sshll.u32 %s339, 4
          %s351 = int_to_ptr.vmem [resolvable:$true] %s350
          %356 = dma.vmem_to_hbm [thread:$0]  %s351, 512, %s349, %s336, 128, 128, 8
        $region36: #{tpu_custom_call.1} parent=31 // pred_fallthru
          _
      $region32: #{tpu_custom_call.1} parent=5 // pred_fallthru
        _
      %p357 = scmp.le.s32.totalorder 2, %s12
      // Predicated region
      $region37: #{tpu_custom_call.1} parent=5 // pred_check
        %p358 = pneg %p357
      $region38: #{tpu_custom_call.1} parent=5 // pred_check_branch
        %360 = sbr.rel (%p358) target = $region40
      $region39: #{tpu_custom_call.1} parent=5 // pred_region
        %s361 = ssub.s32 %s12, 2
        // Predicated region
        $region41: #{tpu_custom_call.1} parent=39 // pred_check
          %p362 = pneg %p133
        $region42: #{tpu_custom_call.1} parent=39 // pred_check_branch
          %364 = sbr.rel (%p362) target = $region44
        $region43: #{tpu_custom_call.1} parent=39 // pred_region
          %s365 = sand.u32 %s118, 1
          %s366 = scalar_lea.sflag [#allocation3], %s365
          %s367 = sand.u32 %s118, 1
          %s368 = smul.addr %s367, 32
          %s369 = scalar_lea.vmem [#allocation2], %s368
          %370 = dma.done %s366, 512
        $region44: #{tpu_custom_call.1} parent=39 // pred_fallthru
          _
      $region40: #{tpu_custom_call.1} parent=5 // pred_fallthru
        _
    $region6: #{tpu_custom_call.1} parent=1 // loop_footer
      %s16 = sadd.s32 1, %s12
    $region7: #{tpu_custom_call.1} parent=1 // loop_footer_branch
      %11 = sbr.rel target = $region3
    $region8: #{tpu_custom_call.1} parent=1 // loop_exit
      _
    %371 = vsyncpa [#allocation3], 1
    %s372 = scalar_lea.sflag [#allocation3], 1
    %373 = vsyncpa %s372, 1

// kernel: tpu_custom_call.1
$region0: #{tpu_custom_call.1}
  #allocation0 [shape = 'u32[]', space=smem, size = 0x4, offset = 0x4, fixed_abs, tag = 'smem constant byte address 0x4 - core index']
  #allocation1 [shape = 'u32[144,128]{1,0:T(1,128)}', space=vmem, size = 0x12000, scoped, tag = 'internal scratch']
  %s0 = inlined_call_operand.vmem [shape: f32[64,32], index: 0, kind: input, shape index: {}]
  %s1 = inlined_call_operand.vmem [shape: f32[32,64], index: 1, kind: input, shape index: {}]
  %s2 = inlined_call_operand.vmem [shape: f32[1,64], index: 2, kind: input, shape index: {}]
  %s3 = inlined_call_operand.hbm [shape: f32[64,64], index: 3, kind: output, shape index: {}]
  %s4 = sld [smem:[#allocation0]]
  $region45: #{tpu_custom_call.1} parent=0
    _
  %s6 = ssub.s32 1, %s4
  %s7 = scalar_select 0, %s6, %s4
  $region1: #{tpu_custom_call.1} parent=0
    #allocation2 [shape = 'u8[32768]{0}', space=vmem, size = 0x8000, scoped, tag = 'output window, operand 0']
    #allocation3 [shape = 's32[2]{0}', space=sflag, size = 0x8, scoped, tag = 'scoped memory for tpu_custom_call.1']
    %8 = vsyncpa [#allocation3], 0
    %s9 = scalar_lea.sflag [#allocation3], 1
    %10 = vsyncpa %s9, 0
    loop: start=0, step=1, limit=4
    $region2: #{tpu_custom_call.1} parent=1 // loop_pre_header
      _
    $region3: #{tpu_custom_call.1} parent=1 // loop_header
      %s12 = sphi 0, %s16
      %p13 = scmp.ge.s32.totalorder %s12, 4
      %s19 = sphi 0, %s31
      %s20 = sphi 0, %s27
      %s21 = sphi 0, %s19
      %s22 = sphi 0, %s20
      %s23 = sphi 0, %s21
      %s24 = sphi 0, %s22
      %s34 = sphi 0, %s36
      %s37 = sphi 0, %s34
      %s38 = sphi 0, %s37
      %s54 = sphi 0, %s38
      %s60 = sphi 0, %s62
      %s63 = sphi 0, %s60
      %s64 = sphi 0, %s63
      %s80 = sphi 0, %s64
      %s86 = sphi 0, %s88
      %s89 = sphi 0, %s86
      %s90 = sphi 0, %s89
      %s106 = sphi 0, %s90
      %s114 = sphi 0, %s116
      %s117 = sphi 0, %s114
      %s118 = sphi 0, %s117
      %s134 = sphi 0, %s118
    $region4: #{tpu_custom_call.1} parent=1 // loop_header_branch
      %15 = sbr.rel (%p13) target = $region8
    $region5: #{tpu_custom_call.1} parent=1 // loop_body
      %s17 = ssub.s32 %s12, 1
      %s18 = ssub.s32 %s12, 2
      %s25 = sadd.s32 1, %s20
      %p26 = scmp.ge.s32.totalorder %s25, 1
      %s27 = scalar_select %p26, 0, %s25
      %s28 = sadd.s32 1, %s19
      %s29 = scalar_select %p26, %s28, %s19
      %p30 = scmp.ge.s32.totalorder %s29, 2
      %s31 = scalar_select %p30, 0, %s29
      %s32 = ssub.s32 %s19, %s31
      %p33 = scmp.eq.s32.totalorder %s32, 0
      %s35 = sadd.s32 %s34, 1
      %s36 = scalar_select %p33, %s34, %s35
      %p39 = pneg %p33
      %p40 = scmp.eq.s32.totalorder %s12, 1
      %p41 = por %p39, %p40
      %p42 = scmp.ne.s32.totalorder %s34, %s37
      %p43 = scmp.eq.s32.totalorder %s12, 0
      %p44 = por %p42, %p43
      %p45 = scmp.ne.s32.totalorder %s34, %s37
      %p46 = scmp.eq.s32.totalorder %s17, 1
      %p47 = por %p45, %p46
      %p48 = scmp.ne.s32.totalorder %s37, %s38
      %p49 = scmp.eq.s32.totalorder %s17, 0
      %p50 = por %p48, %p49
      %p51 = scmp.ne.s32.totalorder %s37, %s38
      %p52 = scmp.eq.s32.totalorder %s18, 1
      %p53 = por %p51, %p52
      %p55 = scmp.ne.s32.totalorder %s38, %s54
      %p56 = scmp.eq.s32.totalorder %s18, 0
      %p57 = por %p55, %p56
      %s58 = ssub.s32 %s20, %s27
      %p59 = scmp.eq.s32.totalorder %s58, 0
      %s61 = sadd.s32 %s60, 1
      %s62 = scalar_select %p59, %s60, %s61
      %p65 = pneg %p59
      %p66 = scmp.eq.s32.totalorder %s12, 1
      %p67 = por %p65, %p66
      %p68 = scmp.ne.s32.totalorder %s60, %s63
      %p69 = scmp.eq.s32.totalorder %s12, 0
      %p70 = por %p68, %p69
      %p71 = scmp.ne.s32.totalorder %s60, %s63
      %p72 = scmp.eq.s32.totalorder %s17, 1
      %p73 = por %p71, %p72
      %p74 = scmp.ne.s32.totalorder %s63, %s64
      %p75 = scmp.eq.s32.totalorder %s17, 0
      %p76 = por %p74, %p75
      %p77 = scmp.ne.s32.totalorder %s63, %s64
      %p78 = scmp.eq.s32.totalorder %s18, 1
      %p79 = por %p77, %p78
      %p81 = scmp.ne.s32.totalorder %s64, %s80
      %p82 = scmp.eq.s32.totalorder %s18, 0
      %p83 = por %p81, %p82
      %s84 = ssub.s32 %s20, %s27
      %p85 = scmp.eq.s32.totalorder %s84, 0
      %s87 = sadd.s32 %s86, 1
      %s88 = scalar_select %p85, %s86, %s87
      %p91 = pneg %p85
      %p92 = scmp.eq.s32.totalorder %s12, 1
      %p93 = por %p91, %p92
      %p94 = scmp.ne.s32.totalorder %s86, %s89
      %p95 = scmp.eq.s32.totalorder %s12, 0
      %p96 = por %p94, %p95
      %p97 = scmp.ne.s32.totalorder %s86, %s89
      %p98 = scmp.eq.s32.totalorder %s17, 1
      %p99 = por %p97, %p98
      %p100 = scmp.ne.s32.totalorder %s89, %s90
      %p101 = scmp.eq.s32.totalorder %s17, 0
      %p102 = por %p100, %p101
      %p103 = scmp.ne.s32.totalorder %s89, %s90
      %p104 = scmp.eq.s32.totalorder %s18, 1
      %p105 = por %p103, %p104
      %p107 = scmp.ne.s32.totalorder %s90, %s106
      %p108 = scmp.eq.s32.totalorder %s18, 0
      %p109 = por %p107, %p108
      %s110 = ssub.s32 %s19, %s31
      %s111 = ssub.s32 %s20, %s27
      %s112 = sor.u32 %s110, %s111
      %p113 = scmp.eq.s32.totalorder %s112, 0
      %s115 = sadd.s32 %s114, 1
      %s116 = scalar_select %p113, %s114, %s115
      %p119 = pneg %p113
      %p120 = scmp.eq.s32.totalorder %s12, 1
      %p121 = por %p119, %p120
      %p122 = scmp.ne.s32.totalorder %s114, %s117
      %p123 = scmp.eq.s32.totalorder %s12, 0
      %p124 = por %p122, %p123
      %p125 = scmp.ne.s32.totalorder %s114, %s117
      %p126 = scmp.eq.s32.totalorder %s17, 1
      %p127 = por %p125, %p126
      %p128 = scmp.ne.s32.totalorder %s117, %s118
      %p129 = scmp.eq.s32.totalorder %s17, 0
      %p130 = por %p128, %p129
      %p131 = scmp.ne.s32.totalorder %s117, %s118
      %p132 = scmp.eq.s32.totalorder %s18, 1
      %p133 = por %p131, %p132
      %p135 = scmp.ne.s32.totalorder %s118, %s134
      %p136 = scmp.eq.s32.totalorder %s18, 0
      %p137 = por %p135, %p136
      %p138 = scmp.le.s32.totalorder 1, %s12
      %p139 = scmp.lt.s32.totalorder %s12, 3
      %p140 = pnand %p138, %p139
      %p141 = pneg %p140
      // Predicated region
      $region9: #{tpu_custom_call.1} parent=5 // pred_check
        _
      $region10: #{tpu_custom_call.1} parent=5 // pred_check_branch
        %143 = sbr.rel (%p140) target = $region12
      $region11: #{tpu_custom_call.1} parent=5 // pred_region
        %s144 = ssub.s32 %s12, 1
        // Predicated region
        $region13: #{tpu_custom_call.1} parent=11 // pred_check
          %p145 = pneg %p76
        $region14: #{tpu_custom_call.1} parent=11 // pred_check_branch
          %147 = sbr.rel (%p145) target = $region16
        $region15: #{tpu_custom_call.1} parent=11 // pred_region
          %p148 = scmp.lt.s32.totalorder %s22, 0
          %s149 = scalar_select %p148, %s22, 0
          %s150 = smul.addr %s149, 8
          %s151 = scalar_lea.vmem %s1, %s150
        $region16: #{tpu_custom_call.1} parent=11 // pred_fallthru
          _
        // Predicated region
        $region17: #{tpu_custom_call.1} parent=11 // pred_check
          %p152 = pneg %p102
        $region18: #{tpu_custom_call.1} parent=11 // pred_check_branch
          %154 = sbr.rel (%p152) target = $region20
        $region19: #{tpu_custom_call.1} parent=11 // pred_region
          %p155 = scmp.lt.s32.totalorder %s22, 0
          %s156 = scalar_select %p155, %s22, 0
          %s157 = scalar_lea.vmem %s2, %s156
        $region20: #{tpu_custom_call.1} parent=11 // pred_fallthru
          _
      $region12: #{tpu_custom_call.1} parent=5 // pred_fallthru
        _
      %p158 = scmp.lt.s32.totalorder %s12, 2
      // Predicated region
      $region21: #{tpu_custom_call.1} parent=5 // pred_check
        %p159 = pneg %p158
      $region22: #{tpu_custom_call.1} parent=5 // pred_check_branch
        %161 = sbr.rel (%p159) target = $region24
      $region23: #{tpu_custom_call.1} parent=5 // pred_region
        // Predicated region
        $region25: #{tpu_custom_call.1} parent=23 // pred_check
          %p162 = pneg %p44
        $region26: #{tpu_custom_call.1} parent=23 // pred_check_branch
          %164 = sbr.rel (%p162) target = $region28
        $region27: #{tpu_custom_call.1} parent=23 // pred_region
          %s165 = smul.u32 4, %s19
          %p166 = scmp.lt.s32.totalorder %s165, 7
          %s167 = scalar_select %p166, %s165, 7
          %s168 = smul.addr %s167, 8
          %s169 = scalar_lea.vmem %s0, %s168
          %s170 = smul.u32 4, %s19
        $region28: #{tpu_custom_call.1} parent=23 // pred_fallthru
          _
      $region24: #{tpu_custom_call.1} parent=5 // pred_fallthru
        _
      %p171 = scmp.le.s32.totalorder 1, %s12
      %p172 = scmp.lt.s32.totalorder %s12, 3
      %p173 = pnand %p171, %p172
      %p174 = pneg %p173
      // Predicated region
      $region29: #{tpu_custom_call.1} parent=5 // pred_check
        _
      $region30: #{tpu_custom_call.1} parent=5 // pred_check_branch
        %176 = sbr.rel (%p173) target = $region32
      $region31: #{tpu_custom_call.1} parent=5 // pred_region
        %s177 = ssub.s32 %s12, 1
        %s178 = smul.u32 4, %s21
        %p179 = scmp.lt.s32.totalorder %s178, 7
        %s180 = scalar_select %p179, %s178, 7
        %s181 = smul.addr %s180, 8
        %s182 = scalar_lea.vmem %s0, %s181
        %p183 = pneg %p50
        %p184 = pneg %p47
        %p185 = scmp.lt.s32.totalorder %s22, 0
        %s186 = scalar_select %p185, %s22, 0
        %s187 = smul.addr %s186, 8
        %s188 = scalar_lea.vmem %s1, %s187
        %p189 = pneg %p76
        %p190 = pneg %p73
        %p191 = scmp.lt.s32.totalorder %s22, 0
        %s192 = scalar_select %p191, %s22, 0
        %s193 = scalar_lea.vmem %s2, %s192
        %p194 = pneg %p102
        %p195 = pneg %p99
        %p196 = pneg %p130
        %p197 = pneg %p127
        %s198 = sand.u32 %s117, 1
        %s199 = scalar_lea.sflag [#allocation3], %s198
        %s200 = sand.u32 %s117, 1
        %s201 = smul.addr %s200, 32
        %s202 = scalar_lea.vmem [#allocation2], %s201
        %s203 = smul.u32 4, %s21
        %p204 = scmp.lt.s32.totalorder %s203, 7
        %s205 = scalar_select %p204, %s203, 7
        %s206 = smul.addr %s205, 8
        %s207 = scalar_lea.vmem %s0, %s206
        %s208 = smul.u32 4, %s21
        %p209 = scmp.lt.s32.totalorder %s22, 0
        %s210 = scalar_select %p209, %s22, 0
        %s211 = smul.addr %s210, 8
        %s212 = scalar_lea.vmem %s1, %s211
        %p213 = scmp.lt.s32.totalorder %s22, 0
        %s214 = scalar_select %p213, %s22, 0
        %s215 = scalar_lea.vmem %s2, %s214
        %s216 = smul.u32 4, %s21
        %v217 = vld [vmem:[%s207] sm:$0xff]
        %v218 = vld [vmem:[%s207 + $0x8] sm:$0xff]
        %v219 = vld [vmem:[%s207 + $0x10] sm:$0xff]
        %v220 = vld [vmem:[%s207 + $0x18] sm:$0xff]
        %v221 = vld [vmem:[%s212] sm:$0xff]
        %v222 = vld [vmem:[%s212 + $0x8] sm:$0xff]
        %v223 = vld [vmem:[%s212 + $0x10] sm:$0xff]
        %v224 = vld [vmem:[%s212 + $0x18] sm:$0xff]
        %v225 = vld [vmem:[%s215] sm:$0x1]
        %v227 = vlaneseq
        %v228 = vshrl.u32 %v227, 7
        %v229 = vsub.s32 0, %v228
        %v230 = vrot.slane %v225, %v229
        %vm232 = vcmask 261120
        %v234 = vsel %vm232, %v217, 0
        %v237 = vsel %vm232, %v218, 0
        %v240 = vsel %vm232, %v219, 0
        %v243 = vsel %vm232, %v220, 0
        %245 = vmatprep.subr.mxu0 0.0
        %246 = vmatpush1.msra.mxu0 0.0
        %247 = vmatprep.subr.mxu0 0.0
        %248 = vmatpush1.msra.mxu0 0.0
        %249 = vmatprep.subr.mxu0 0.0
        %250 = vmatpush1.msra.mxu0 0.0
        %251 = vmatprep.subr.mxu0 0.0
        %252 = vmatpush1.msra.mxu0 0.0
        %253 = vmatprep.subr.mxu0 0.0
        %254 = vmatpush1.msra.mxu0 0.0
        %255 = vmatprep.subr.mxu0 0.0
        %256 = vmatpush1.msra.mxu0 0.0
        %257 = vmatprep.subr.mxu0 0.0
        %258 = vmatpush1.msra.mxu0 0.0
        %259 = vmatprep.subr.mxu0 0.0
        %260 = vmatpush1.msra.mxu0 0.0
        %261 = vmatprep.subr.mxu0 0.0
        %262 = vmatpush1.msra.mxu0 0.0
        %263 = vmatprep.subr.mxu0 0.0
        %264 = vmatpush1.msra.mxu0 0.0
        %265 = vmatprep.subr.mxu0 0.0
        %266 = vmatpush1.msra.mxu0 0.0
        %267 = vmatprep.subr.mxu0 0.0
        %268 = vmatpush1.msra.mxu0 0.0
        %269 = vmatprep.subr.mxu0 0.0
        %270 = vmatpush1.msra.mxu0 %v224
        %271 = vmatprep.subr.mxu0 0.0
        %272 = vmatpush1.msra.mxu0 %v223
        %273 = vmatprep.subr.mxu0 0.0
        %274 = vmatpush1.msra.mxu0 %v222
        %275 = vmatprep.subr.mxu0 0.0
        %276 = vmatpush1.msra.mxu0 %v221
        %277 = vmatprep.subr.mxu0 0.0
        %278 = vmatpush2.msra.mxu0 0.0
        %279 = vmatprep.subr.mxu0 0.0
        %280 = vmatpush2.msra.mxu0 0.0
        %281 = vmatprep.subr.mxu0 0.0
        %282 = vmatpush2.msra.mxu0 0.0
        %283 = vmatprep.subr.mxu0 0.0
        %284 = vmatpush2.msra.mxu0 0.0
        %285 = vmatprep.subr.mxu0 0.0
        %286 = vmatpush2.msra.mxu0 0.0
        %287 = vmatprep.subr.mxu0 0.0
        %288 = vmatpush2.msra.mxu0 0.0
        %289 = vmatprep.subr.mxu0 0.0
        %290 = vmatpush2.msra.mxu0 0.0
        %291 = vmatprep.subr.mxu0 0.0
        %292 = vmatpush2.msra.mxu0 0.0
        %293 = vmatprep.subr.mxu0 0.0
        %294 = vmatpush2.msra.mxu0 0.0
        %295 = vmatprep.subr.mxu0 0.0
        %296 = vmatpush2.msra.mxu0 0.0
        %297 = vmatprep.subr.mxu0 0.0
        %298 = vmatpush2.msra.mxu0 0.0
        %299 = vmatprep.subr.mxu0 0.0
        %300 = vmatpush2.msra.mxu0 0.0
        %301 = vmatprep.subr.mxu0 0.0
        %302 = vmatpush2.msra.mxu0 0.0
        %303 = vmatprep.subr.mxu0 0.0
        %304 = vmatpush2.msra.mxu0 0.0
        %305 = vmatprep.subr.mxu0 0.0
        %306 = vmatpush2.msra.mxu0 0.0
        %307 = vmatprep.subr.mxu0 0.0
        %308 = vmatpush2.msra.mxu0 0.0
        %309 = vmatprep.mubr.f32.mxu0 0.0
        %310 = vmatmul.mubr.f32.gmra.mxu0 %v234
        %v311 = vpop.f32.mrf.mxu0
        %v312 = vadd.f32 %v230, %v311
        %v313 = vpop.f32.mrf.mxu0
        %314 = vmatprep.mubr.f32.mxu0 0.0
        %315 = vmatmul.mubr.f32.gmra.mxu0 %v237
        %v316 = vpop.f32.mrf.mxu0
        %v317 = vadd.f32 %v230, %v316
        %v318 = vpop.f32.mrf.mxu0
        %319 = vmatprep.mubr.f32.mxu0 0.0
        %320 = vmatmul.mubr.f32.gmra.mxu0 %v240
        %v321 = vpop.f32.mrf.mxu0
        %v322 = vadd.f32 %v230, %v321
        %v323 = vpop.f32.mrf.mxu0
        %324 = vmatprep.mubr.f32.mxu0 0.0
        %325 = vmatmul.mubr.f32.gmra.mxu0 %v243
        %v326 = vpop.f32.mrf.mxu0
        %v327 = vadd.f32 %v230, %v326
        %v328 = vpop.f32.mrf.mxu0
        %329 = vdwg.mxu0
        %vm330 = vcmask 523264
        %331 = vst.msk [vmem:[%s202] sm:$0xff] %vm330, %v312
        %332 = vst.msk [vmem:[%s202 + $0x8] sm:$0xff] %vm330, %v317
        %333 = vst.msk [vmem:[%s202 + $0x10] sm:$0xff] %vm330, %v322
        %334 = vst.msk [vmem:[%s202 + $0x18] sm:$0xff] %vm330, %v327
        %s335 = sand.u32 %s117, 1
        %s336 = scalar_lea.sflag [#allocation3], %s335
        %s337 = sand.u32 %s117, 1
        %s338 = smul.addr %s337, 32
        %s339 = scalar_lea.vmem [#allocation2], %s338
        // Predicated region
        $region33: #{tpu_custom_call.1} parent=31 // pred_check
          %p340 = pneg %p127
        $region34: #{tpu_custom_call.1} parent=31 // pred_check_branch
          %342 = sbr.rel (%p340) target = $region36
        $region35: #{tpu_custom_call.1} parent=31 // pred_region
          %s343 = smul.u32 4, %s21
          %s345 = ssub.s32 512, 512
          %346 = vsyncadd %s336, %s345
          %s347 = sadd.s32 %s22, %s343
          %s348 = smul.addr %s347, 128
          %s349 = scalar_lea.hbm %s3, %s348
          %s350 = sshll.u32 %s339, 4
          %s351 = int_to_ptr.vmem [resolvable:$true] %s350
          %356 = dma.vmem_to_hbm [thread:$0]  %s351, 512, %s349, %s336, 128, 128, 8
        $region36: #{tpu_custom_call.1} parent=31 // pred_fallthru
          _
      $region32: #{tpu_custom_call.1} parent=5 // pred_fallthru
        _
      %p357 = scmp.le.s32.totalorder 2, %s12
      // Predicated region
      $region37: #{tpu_custom_call.1} parent=5 // pred_check
        %p358 = pneg %p357
      $region38: #{tpu_custom_call.1} parent=5 // pred_check_branch
        %360 = sbr.rel (%p358) target = $region40
      $region39: #{tpu_custom_call.1} parent=5 // pred_region
        %s361 = ssub.s32 %s12, 2
        // Predicated region
        $region41: #{tpu_custom_call.1} parent=39 // pred_check
          %p362 = pneg %p133
        $region42: #{tpu_custom_call.1} parent=39 // pred_check_branch
          %364 = sbr.rel (%p362) target = $region44
        $region43: #{tpu_custom_call.1} parent=39 // pred_region
          %s365 = sand.u32 %s118, 1
          %s366 = scalar_lea.sflag [#allocation3], %s365
          %s367 = sand.u32 %s118, 1
          %s368 = smul.addr %s367, 32
          %s369 = scalar_lea.vmem [#allocation2], %s368
          %370 = dma.done %s366, 512
        $region44: #{tpu_custom_call.1} parent=39 // pred_fallthru
          _
      $region40: #{tpu_custom_call.1} parent=5 // pred_fallthru
        _
    $region6: #{tpu_custom_call.1} parent=1 // loop_footer
      %s16 = sadd.s32 1, %s12
    $region7: #{tpu_custom_call.1} parent=1 // loop_footer_branch
      %11 = sbr.rel target = $region3
    $region8: #{tpu_custom_call.1} parent=1 // loop_exit
      _
    %371 = vsyncpa [#allocation3], 1
    %s372 = scalar_lea.sflag [#allocation3], 1
    %373 = vsyncpa %s372, 1

</llo_original>
